<compile_context>
chip_gen: v7x
topology: tpu7x:2x2x1
jax: 0.10.0
libtpu: 0.0.40
codegen_flags: <defaults>
</compile_context>

<pallas_src>
import math
import numpy as np
import jax
import jax.numpy as jnp
from jax import lax
from jax.experimental import pallas as pl
from jax.experimental.pallas import tpu as pltpu


def _round_up(a, b):
    return (a + b - 1) // b * b


def _cdiv(a, b):
    return (a + b - 1) // b


def musicnet_kernel(x_ref, w1t_ref, b1_ref, w23t_ref, b23_ref, o_ref):
    # x_ref   : (tn_p, P*F)    packed rows (P original rows per packed row)
    # w1t_ref : (P*H1, P*F)    block-diagonal layer-1 weights, transposed form
    # b1_ref  : (P*H1, 1)      replicated layer-1 bias
    # w23t_ref: (P, P*H1)      block-diagonal folded layer-2/3 weights (transposed)
    # b23_ref : (1,) in SMEM   folded layer-2/3 bias (scalar)
    # o_ref   : (P, tn_p)      transposed, sublane- and lane-dense output block
    x = x_ref[...].astype(jnp.float32)

    # h1T[j, r] = sum_k W1bdT[j, k] * x[r, k]   (NT-form: contract last dims)
    h1t = lax.dot_general(
        w1t_ref[...], x,
        dimension_numbers=(((1,), (1,)), ((), ())),
        preferred_element_type=jnp.float32,
    )                                                    # (P*H1, tn_p)
    h1t = jnp.maximum(h1t + b1_ref[...], 0.0)            # bias + ReLU

    # outT[p, r] = sum_j W23bdT[p, j] * h1T[j, r]   (plain matmul)
    out_t = lax.dot_general(
        w23t_ref[...], h1t,
        dimension_numbers=(((1,), (0,)), ((), ())),
        preferred_element_type=jnp.float32,
    )                                                    # (P, tn_p)

    o_ref[...] = (out_t + b23_ref[0]).astype(o_ref.dtype)


def musicnet_forward(img, params, *, target_block_bytes=2 * 1024 * 1024):
    """MusicNet forward pass.

    img: any shape whose element count is divisible by F = num_attributes - 1
         (mirrors `img.view(-1, num_attributes - 1)` in PyTorch).
    params: PyTorch-layout weights:
        w1 (6, F), b1 (6,), w2 (3, 6), b2 (3,), w3 (1, 3), b3 (1,)
    Returns (N, 1) float32.
    """
    w1 = params["w1"].astype(jnp.float32)   # (6, F)
    b1 = params["b1"].astype(jnp.float32)   # (6,)
    w2 = params["w2"].astype(jnp.float32)   # (3, 6)
    b2 = params["b2"].astype(jnp.float32)   # (3,)
    w3 = params["w3"].astype(jnp.float32)   # (1, 3)
    b3 = params["b3"].astype(jnp.float32)   # (1,)

    h1_dim, feat = w1.shape

    x = img.reshape(-1, feat)               # like img.view(-1, num_attributes - 1)
    if x.dtype not in (jnp.float32, jnp.bfloat16):   # bf16 x is allowed (halves HBM reads)
        x = x.astype(jnp.float32)
    n_rows = x.shape[0]

    # ---- packing factor: P original rows per packed row; P*F lane-friendly ----
    if feat >= 128:
        pack = 1
    else:
        pack = 128 // math.gcd(feat, 128)            # smallest P with P*F % 128 == 0
        while pack > 1 and pack * feat > 1024:       # keep block-diagonal weights tiny
            pack //= 2
    packed_f = pack * feat

    # ---- fold layers 2+3 (both affine) and build block-diagonal weights ----
    w23 = (w3 @ w2).reshape(-1)                      # (6,)
    b23 = (b2 @ w3.T + b3).reshape(1)                # (1,)  scalar, goes to SMEM
    eye = jnp.eye(pack, dtype=jnp.float32)
    # W1bdT[p*H1 + h, q*F + f] = delta_pq * W1[h, f]
    w1bd_t = jnp.einsum("pq,hf->phqf", eye, w1).reshape(pack * h1_dim, packed_f)
    # W23bdT[p, q*H1 + h] = delta_pq * w23[h]
    w23bd_t = jnp.einsum("pq,h->pqh", eye, w23).reshape(pack, pack * h1_dim)
    b1_rep = jnp.tile(b1, pack).reshape(pack * h1_dim, 1)

    # ---- tiling: ~target_block_bytes of useful x bytes per grid step ----
    n_packed_min = max(1, _cdiv(n_rows, pack))
    bytes_per_packed_row = packed_f * x.dtype.itemsize
    target_tn_p = max(128, (target_block_bytes // bytes_per_packed_row) // 128 * 128)
    tn_p = min(target_tn_p, _round_up(n_packed_min, 128))
    # v7x megacore: make sure mid/large batches split into >= 2 parallel tiles.
    if n_packed_min >= 1024 and _cdiv(n_packed_min, tn_p) < 2:
        tn_p = _round_up(_cdiv(n_packed_min, 2), 128)
    n_packed = _round_up(n_packed_min, tn_p)
    num_tiles = n_packed // tn_p

    total_rows = n_packed * pack
    if total_rows != n_rows:
        # Only concatenate a small zeros tail (cheaper than re-padding all of x).
        pad = jnp.zeros((total_rows - n_rows, feat), x.dtype)
        x = jnp.concatenate([x, pad], axis=0)
    x_packed = x.reshape(n_packed, packed_f)         # contiguous repack to 128-lane rows

    flops = 2 * total_rows * (h1_dim * feat + h1_dim)
    bytes_accessed = (x_packed.size * x_packed.dtype.itemsize
                      + n_packed * pack * 4
                      + (w1bd_t.size + w23bd_t.size + b1_rep.size + 1) * 4)

    out_t = pl.pallas_call(
        musicnet_kernel,
        out_shape=jax.ShapeDtypeStruct((pack, n_packed), jnp.float32),
        grid_spec=pltpu.PrefetchScalarGridSpec(
            num_scalar_prefetch=0,
            grid=(num_tiles,),
            in_specs=[
                pl.BlockSpec((tn_p, packed_f), lambda i: (i, 0)),            # x tile
                pl.BlockSpec((pack * h1_dim, packed_f), lambda i: (0, 0)),   # W1 block-diag
                pl.BlockSpec((pack * h1_dim, 1), lambda i: (0, 0)),          # b1 replicated
                pl.BlockSpec((pack, pack * h1_dim), lambda i: (0, 0)),       # folded W2@W3
                pl.BlockSpec(memory_space=pltpu.MemorySpace.SMEM),           # folded bias
            ],
            out_specs=pl.BlockSpec((pack, tn_p), lambda i: (0, i)),          # dense output
        ),
        compiler_params=pltpu.CompilerParams(
            dimension_semantics=("parallel",),
        ),
        cost_estimate=pl.CostEstimate(
            flops=int(flops), transcendentals=0, bytes_accessed=int(bytes_accessed)),
    )(x_packed, w1bd_t, b1_rep, w23bd_t, b23)

    # out_t[p, r] is the result for original row r*pack + p -> transpose + flatten.
    out = out_t.T.reshape(-1)[:n_rows]
    return out.reshape(n_rows, 1)


def init_params(key, num_attributes):
    """Deterministic init mimicking nn.Linear (uniform +-1/sqrt(fan_in)), PyTorch layout."""
    feat = num_attributes - 1
    ks = jax.random.split(key, 6)

    def uinit(k, shape, fan_in):
        bound = 1.0 / jnp.sqrt(fan_in)
        return jax.random.uniform(k, shape, jnp.float32, -bound, bound)

    return {
        "w1": uinit(ks[0], (6, feat), feat), "b1": uinit(ks[1], (6,), feat),
        "w2": uinit(ks[2], (3, 6), 6),       "b2": uinit(ks[3], (3,), 6),
        "w3": uinit(ks[4], (1, 3), 3),       "b3": uinit(ks[5], (1,), 3),
    }


if __name__ == "__main__":
    num_attributes = 9          # => F = 8 input features
    feat = num_attributes - 1
    key = jax.random.PRNGKey(0)
    k_param, k_data, k_data2 = jax.random.split(key, 3)

    params = init_params(k_param, num_attributes)

    def reference(img):
        x_np = np.asarray(img, dtype=np.float64).reshape(-1, feat)
        w1n = np.asarray(params["w1"], np.float64); b1n = np.asarray(params["b1"], np.float64)
        w2n = np.asarray(params["w2"], np.float64); b2n = np.asarray(params["b2"], np.float64)
        w3n = np.asarray(params["w3"], np.float64); b3n = np.asarray(params["b3"], np.float64)
        h1 = np.maximum(x_np @ w1n.T + b1n, 0.0)
        return (h1 @ w2n.T + b2n) @ w3n.T + b3n

    # Small case mirroring img.view(-1, num_attributes - 1): (2, 8, 8) -> (16, 8)
    img = jax.random.normal(k_data, (2, 8, 8), dtype=jnp.float32)
    out = jax.block_until_ready(musicnet_forward(img, params))
    assert out.shape == (16, 1)
    assert np.allclose(np.asarray(out), reference(img), atol=1e-4, rtol=1e-4)

    # Ragged, multi-tile case (exercises zero-pad tail + >1 grid step).
    img2 = jax.random.normal(k_data2, (5000, feat), dtype=jnp.float32)
    out2 = jax.block_until_ready(
        musicnet_forward(img2, params, target_block_bytes=64 * 1024))
    assert out2.shape == (5000, 1)
    assert np.allclose(np.asarray(out2), reference(img2), atol=1e-4, rtol=1e-4)

    print("KERNEL_OK")
</pallas_src>

<mosaic_0001>
module attributes {stable_mosaic.version = 11 : i64} {
  func.func @musicnet_kernel(%arg0: i32, %arg1: memref<128x128xf32, #tpu.memory_space<vmem>>, %arg2: memref<96x128xf32, #tpu.memory_space<vmem>>, %arg3: memref<96x1xf32, #tpu.memory_space<vmem>>, %arg4: memref<16x96xf32, #tpu.memory_space<vmem>>, %arg5: memref<1xf32, #tpu.memory_space<smem>>, %arg6: memref<16x128xf32, #tpu.memory_space<vmem>>) attributes {dimension_semantics = [#tpu.dimension_semantics<parallel>], iteration_bounds = array<i64: 1>, scalar_prefetch = 0 : i64, scratch_operands = 0 : i64, tpu.core_type = #tpu.core_type<tc>, window_params = [{transform_indices = @transform_0, window_bounds = array<i64: 128, 128>}, {pipeline_mode = #tpu.pipeline_mode<synchronous>, transform_indices = @transform_1, window_bounds = array<i64: 96, 128>}, {pipeline_mode = #tpu.pipeline_mode<synchronous>, transform_indices = @transform_2, window_bounds = array<i64: 96, 1>}, {pipeline_mode = #tpu.pipeline_mode<synchronous>, transform_indices = @transform_3, window_bounds = array<i64: 16, 96>}, {transform_indices = @transform_4, window_bounds = array<i64: 1>}, {transform_indices = @transform_5, window_bounds = array<i64: 16, 128>}]} {
    %c0 = arith.constant 0 : index
    %c0_0 = arith.constant 0 : index
    %0 = vector.load %arg1[%c0, %c0_0] : memref<128x128xf32, #tpu.memory_space<vmem>>, vector<128x128xf32>
    %c0_1 = arith.constant 0 : index
    %c0_2 = arith.constant 0 : index
    %1 = vector.load %arg2[%c0_1, %c0_2] : memref<96x128xf32, #tpu.memory_space<vmem>>, vector<96x128xf32>
    %cst = arith.constant dense<0.000000e+00> : vector<96x128xf32>
    %2 = tpu.matmul %1, %0, %cst {dimension_numbers = #tpu.dot_dimension_numbers<[1], [1], [0], [0], [0, 0, 1, 0], [], []>} : vector<96x128xf32>, vector<128x128xf32>, vector<96x128xf32> -> vector<96x128xf32>
    %c0_3 = arith.constant 0 : index
    %c0_4 = arith.constant 0 : index
    %3 = vector.load %arg3[%c0_3, %c0_4] : memref<96x1xf32, #tpu.memory_space<vmem>>, vector<96x1xf32>
    %4 = vector.broadcast %3 : vector<96x1xf32> to vector<96x128xf32>
    %5 = arith.addf %2, %4 : vector<96x128xf32>
    %cst_5 = arith.constant 0.000000e+00 : f32
    %6 = vector.broadcast %cst_5 : f32 to vector<96x128xf32>
    %7 = arith.maximumf %5, %6 : vector<96x128xf32>
    %c0_6 = arith.constant 0 : index
    %c0_7 = arith.constant 0 : index
    %8 = vector.load %arg4[%c0_6, %c0_7] : memref<16x96xf32, #tpu.memory_space<vmem>>, vector<16x96xf32>
    %cst_8 = arith.constant dense<0.000000e+00> : vector<16x128xf32>
    %9 = tpu.matmul %8, %7, %cst_8 {dimension_numbers = #tpu.dot_dimension_numbers<[1], [0], [0], [1], [0, 0, 1, 1], [], []>} : vector<16x96xf32>, vector<96x128xf32>, vector<16x128xf32> -> vector<16x128xf32>
    %c0_9 = arith.constant 0 : index
    %10 = memref.load %arg5[%c0_9] : memref<1xf32, #tpu.memory_space<smem>>
    %11 = vector.broadcast %10 : f32 to vector<16x128xf32>
    %12 = arith.addf %9, %11 : vector<16x128xf32>
    %c0_10 = arith.constant 0 : index
    %c0_11 = arith.constant 0 : index
    %13 = vector.load %arg6[%c0_10, %c0_11] : memref<16x128xf32, #tpu.memory_space<vmem>>, vector<16x128xf32>
    tpu.vector_store %arg6[%c0_10, %c0_11], %12 {strides = array<i32>} : memref<16x128xf32, #tpu.memory_space<vmem>>, vector<16x128xf32>,
    return
  }
  func.func @transform_0(%arg0: i32) -> (i32, i32) {
    %c0_i32 = arith.constant 0 : i32
    %c0_i32_0 = arith.constant 0 : i32
    return %arg0, %c0_i32 : i32, i32
  }
  func.func @transform_1(%arg0: i32) -> (i32, i32) {
    %c0_i32 = arith.constant 0 : i32
    %c0_i32_0 = arith.constant 0 : i32
    %c0_i32_1 = arith.constant 0 : i32
    return %c0_i32, %c0_i32_0 : i32, i32
  }
  func.func @transform_2(%arg0: i32) -> (i32, i32) {
    %c0_i32 = arith.constant 0 : i32
    %c0_i32_0 = arith.constant 0 : i32
    %c0_i32_1 = arith.constant 0 : i32
    return %c0_i32, %c0_i32_0 : i32, i32
  }
  func.func @transform_3(%arg0: i32) -> (i32, i32) {
    %c0_i32 = arith.constant 0 : i32
    %c0_i32_0 = arith.constant 0 : i32
    %c0_i32_1 = arith.constant 0 : i32
    return %c0_i32, %c0_i32_0 : i32, i32
  }
  func.func @transform_4(%arg0: i32) -> i32 {
    %c0_i32 = arith.constant 0 : i32
    %c0_i32_0 = arith.constant 0 : i32
    return %c0_i32 : i32
  }
  func.func @transform_5(%arg0: i32) -> (i32, i32) {
    %c0_i32 = arith.constant 0 : i32
    %c0_i32_0 = arith.constant 0 : i32
    return %c0_i32, %arg0 : i32, i32
  }
}

</mosaic_0001>

<llo_original>
// kernel: tpu_custom_call.1
$region0: #{tpu_custom_call.1}
  #allocation0 [shape = 'u32[]', space=smem, size = 0x4, offset = 0x4, fixed_abs, tag = 'smem constant byte address 0x4 - core index']
  #allocation1 [shape = 'u32[144,128]{1,0:T(1,128)}', space=vmem, size = 0x12000, scoped, tag = 'internal scratch']
  #allocation2 [shape = 'f32[1]{0:T(128)S(6)}', space=smem, size = 0x200, scoped, tag = 'scoped memory for tpu_custom_call.1']
  %s0 = inlined_call_operand.hbm [shape: f32[128,128], index: 0, kind: input, shape index: {}]
  %s1 = inlined_call_operand.vmem [shape: f32[96,128], index: 1, kind: input, shape index: {}]
  %s2 = inlined_call_operand.vmem [shape: f32[96,1], index: 2, kind: input, shape index: {}]
  %s3 = inlined_call_operand.vmem [shape: f32[16,96], index: 3, kind: input, shape index: {}]
  %s4 = inlined_call_operand.<no memory space> [shape: f32[1], index: 4, kind: input, shape index: {}]
  %s5 = inlined_call_operand.hbm [shape: f32[16,128], index: 5, kind: output, shape index: {}]
  %s6 = sld [smem:[#allocation0]]
  $region34: #{tpu_custom_call.1} parent=0
    _
  %s8 = ssub.s32 1, %s6
  %s9 = scalar_select 0, %s8, %s6
  %10 = sst [smem:[#allocation2]] %s4
  $region1: #{tpu_custom_call.1} parent=0
    #allocation3 [shape = 'u8[65536]{0}', space=vmem, size = 0x10000, scoped, tag = 'input window, operand 0, single buffered']
    #allocation4 [shape = 's32[1]{0}', space=sflag, size = 0x4, scoped, tag = 'scoped memory for tpu_custom_call.1']
    #allocation5 [shape = 's32[1]{0}', space=sflag, size = 0x4, scoped, tag = 'scoped memory for tpu_custom_call.1']
    #allocation6 [shape = 'u8[8192]{0}', space=vmem, size = 0x2000, scoped, tag = 'output window, operand 0, single buffered']
    %11 = vsyncpa [#allocation4], 0
    %12 = vsyncpa [#allocation5], 0
    // Predicated region
    $region2: #{tpu_custom_call.1} parent=1 // pred_check
      _
    $region3: #{tpu_custom_call.1} parent=1 // pred_check_branch
      %14 = sbr.rel (0) target = $region5
    $region4: #{tpu_custom_call.1} parent=1 // pred_region
      %s16 = ssub.s32 2048, 2048
      %17 = vsyncadd [#allocation4], %s16
      %s18 = sshll.u32 [#allocation3], 4
      %s19 = int_to_ptr.vmem [resolvable:$true] %s18
      %24 = dma.hbm_to_vmem [thread:$0]  %s0, 2048, %s19, [#allocation4], 128, 128, 8
    $region5: #{tpu_custom_call.1} parent=1 // pred_fallthru
      _
    // Predicated region
    $region6: #{tpu_custom_call.1} parent=1 // pred_check
      _
    $region7: #{tpu_custom_call.1} parent=1 // pred_check_branch
      %26 = sbr.rel (0) target = $region9
    $region8: #{tpu_custom_call.1} parent=1 // pred_region
      _
    $region9: #{tpu_custom_call.1} parent=1 // pred_fallthru
      _
    // Predicated region
    $region10: #{tpu_custom_call.1} parent=1 // pred_check
      _
    $region11: #{tpu_custom_call.1} parent=1 // pred_check_branch
      %28 = sbr.rel (0) target = $region13
    $region12: #{tpu_custom_call.1} parent=1 // pred_region
      _
    $region13: #{tpu_custom_call.1} parent=1 // pred_fallthru
      _
    // Predicated region
    $region14: #{tpu_custom_call.1} parent=1 // pred_check
      _
    $region15: #{tpu_custom_call.1} parent=1 // pred_check_branch
      %30 = sbr.rel (0) target = $region17
    $region16: #{tpu_custom_call.1} parent=1 // pred_region
      _
    $region17: #{tpu_custom_call.1} parent=1 // pred_fallthru
      _
    // Predicated region
    $region18: #{tpu_custom_call.1} parent=1 // pred_check
      _
    $region19: #{tpu_custom_call.1} parent=1 // pred_check_branch
      %32 = sbr.rel (0) target = $region21
    $region20: #{tpu_custom_call.1} parent=1 // pred_region
      _
    $region21: #{tpu_custom_call.1} parent=1 // pred_fallthru
      _
    // Predicated region
    $region22: #{tpu_custom_call.1} parent=1 // pred_check
      _
    $region23: #{tpu_custom_call.1} parent=1 // pred_check_branch
      %34 = sbr.rel (0) target = $region25
    $region24: #{tpu_custom_call.1} parent=1 // pred_region
      %35 = dma.done [#allocation4], 2048
    $region25: #{tpu_custom_call.1} parent=1 // pred_fallthru
      _
    %v36 = vld [vmem:[#allocation3] sm:$0xff]
    %v37 = vld [vmem:[#allocation3 + $0x8] sm:$0xff]
    %v38 = vld [vmem:[#allocation3 + $0x10] sm:$0xff]
    %v39 = vld [vmem:[#allocation3 + $0x18] sm:$0xff]
    %v40 = vld [vmem:[#allocation3 + $0x20] sm:$0xff]
    %v41 = vld [vmem:[#allocation3 + $0x28] sm:$0xff]
    %v42 = vld [vmem:[#allocation3 + $0x30] sm:$0xff]
    %v43 = vld [vmem:[#allocation3 + $0x38] sm:$0xff]
    %v44 = vld [vmem:[#allocation3 + $0x40] sm:$0xff]
    %v45 = vld [vmem:[#allocation3 + $0x48] sm:$0xff]
    %v46 = vld [vmem:[#allocation3 + $0x50] sm:$0xff]
    %v47 = vld [vmem:[#allocation3 + $0x58] sm:$0xff]
    %v48 = vld [vmem:[#allocation3 + $0x60] sm:$0xff]
    %v49 = vld [vmem:[#allocation3 + $0x68] sm:$0xff]
    %v50 = vld [vmem:[#allocation3 + $0x70] sm:$0xff]
    %v51 = vld [vmem:[#allocation3 + $0x78] sm:$0xff]
    %v52 = vld [vmem:[%s1] sm:$0xff]
    %v53 = vld [vmem:[%s1 + $0x8] sm:$0xff]
    %v54 = vld [vmem:[%s1 + $0x10] sm:$0xff]
    %v55 = vld [vmem:[%s1 + $0x18] sm:$0xff]
    %v56 = vld [vmem:[%s1 + $0x20] sm:$0xff]
    %v57 = vld [vmem:[%s1 + $0x28] sm:$0xff]
    %v58 = vld [vmem:[%s1 + $0x30] sm:$0xff]
    %v59 = vld [vmem:[%s1 + $0x38] sm:$0xff]
    %v60 = vld [vmem:[%s1 + $0x40] sm:$0xff]
    %v61 = vld [vmem:[%s1 + $0x48] sm:$0xff]
    %v62 = vld [vmem:[%s1 + $0x50] sm:$0xff]
    %v63 = vld [vmem:[%s1 + $0x58] sm:$0xff]
    %v64 = vld [vmem:[%s2] sm:$0xff]
    %v65 = vld [vmem:[%s2 + $0x8] sm:$0xff]
    %v66 = vld [vmem:[%s2 + $0x10] sm:$0xff]
    %v67 = vld [vmem:[%s2 + $0x18] sm:$0xff]
    %v68 = vld [vmem:[%s2 + $0x20] sm:$0xff]
    %v69 = vld [vmem:[%s2 + $0x28] sm:$0xff]
    %v70 = vld [vmem:[%s2 + $0x30] sm:$0xff]
    %v71 = vld [vmem:[%s2 + $0x38] sm:$0xff]
    %v72 = vld [vmem:[%s2 + $0x40] sm:$0xff]
    %v73 = vld [vmem:[%s2 + $0x48] sm:$0xff]
    %v74 = vld [vmem:[%s2 + $0x50] sm:$0xff]
    %v75 = vld [vmem:[%s2 + $0x58] sm:$0xff]
    %77 = vset.pattern.permute.xlu0 0
    %78 = vperm.xlu0 %77, %v64
    %v79 = vpop.permute.xlu0 %78
    %82 = vset.pattern.permute.xlu0 0
    %83 = vperm.xlu0 %82, %v65
    %v84 = vpop.permute.xlu0 %83
    %87 = vset.pattern.permute.xlu0 0
    %88 = vperm.xlu0 %87, %v66
    %v89 = vpop.permute.xlu0 %88
    %92 = vset.pattern.permute.xlu0 0
    %93 = vperm.xlu0 %92, %v67
    %v94 = vpop.permute.xlu0 %93
    %97 = vset.pattern.permute.xlu0 0
    %98 = vperm.xlu0 %97, %v68
    %v99 = vpop.permute.xlu0 %98
    %102 = vset.pattern.permute.xlu0 0
    %103 = vperm.xlu0 %102, %v69
    %v104 = vpop.permute.xlu0 %103
    %107 = vset.pattern.permute.xlu0 0
    %108 = vperm.xlu0 %107, %v70
    %v109 = vpop.permute.xlu0 %108
    %112 = vset.pattern.permute.xlu0 0
    %113 = vperm.xlu0 %112, %v71
    %v114 = vpop.permute.xlu0 %113
    %117 = vset.pattern.permute.xlu0 0
    %118 = vperm.xlu0 %117, %v72
    %v119 = vpop.permute.xlu0 %118
    %122 = vset.pattern.permute.xlu0 0
    %123 = vperm.xlu0 %122, %v73
    %v124 = vpop.permute.xlu0 %123
    %127 = vset.pattern.permute.xlu0 0
    %128 = vperm.xlu0 %127, %v74
    %v129 = vpop.permute.xlu0 %128
    %132 = vset.pattern.permute.xlu0 0
    %133 = vperm.xlu0 %132, %v75
    %v134 = vpop.permute.xlu0 %133
    %136 = vmatprep.subr.mxu0 0.0
    %137 = vmatpush1.xpose.msra.mxu0 %v36
    %138 = vmatprep.subr.mxu0 0.0
    %139 = vmatpush1.xpose.msra.mxu0 %v37
    %140 = vmatprep.subr.mxu0 0.0
    %141 = vmatpush1.xpose.msra.mxu0 %v38
    %142 = vmatprep.subr.mxu0 0.0
    %143 = vmatpush1.xpose.msra.mxu0 %v39
    %144 = vmatprep.subr.mxu0 0.0
    %145 = vmatpush1.xpose.msra.mxu0 %v40
    %146 = vmatprep.subr.mxu0 0.0
    %147 = vmatpush1.xpose.msra.mxu0 %v41
    %148 = vmatprep.subr.mxu0 0.0
    %149 = vmatpush1.xpose.msra.mxu0 %v42
    %150 = vmatprep.subr.mxu0 0.0
    %151 = vmatpush1.xpose.msra.mxu0 %v43
    %152 = vmatprep.subr.mxu0 0.0
    %153 = vmatpush1.xpose.msra.mxu0 %v44
    %154 = vmatprep.subr.mxu0 0.0
    %155 = vmatpush1.xpose.msra.mxu0 %v45
    %156 = vmatprep.subr.mxu0 0.0
    %157 = vmatpush1.xpose.msra.mxu0 %v46
    %158 = vmatprep.subr.mxu0 0.0
    %159 = vmatpush1.xpose.msra.mxu0 %v47
    %160 = vmatprep.subr.mxu0 0.0
    %161 = vmatpush1.xpose.msra.mxu0 %v48
    %162 = vmatprep.subr.mxu0 0.0
    %163 = vmatpush1.xpose.msra.mxu0 %v49
    %164 = vmatprep.subr.mxu0 0.0
    %165 = vmatpush1.xpose.msra.mxu0 %v50
    %166 = vmatprep.subr.mxu0 0.0
    %167 = vmatpush1.xpose.msra.mxu0 %v51
    %168 = vmatprep.subr.mxu0 0.0
    %169 = vmatpush1.xpose.msra.mxu0 0.0
    %170 = vmatprep.subr.mxu0 0.0
    %171 = vmatpush1.xpose.msra.mxu0 0.0
    %172 = vmatprep.subr.mxu0 0.0
    %173 = vmatpush1.xpose.msra.mxu0 0.0
    %174 = vmatprep.subr.mxu0 0.0
    %175 = vmatpush1.xpose.msra.mxu0 0.0
    %176 = vmatprep.subr.mxu0 0.0
    %177 = vmatpush1.xpose.msra.mxu0 0.0
    %178 = vmatprep.subr.mxu0 0.0
    %179 = vmatpush1.xpose.msra.mxu0 0.0
    %180 = vmatprep.subr.mxu0 0.0
    %181 = vmatpush1.xpose.msra.mxu0 0.0
    %182 = vmatprep.subr.mxu0 0.0
    %183 = vmatpush1.xpose.msra.mxu0 0.0
    %184 = vmatprep.subr.mxu0 0.0
    %185 = vmatpush1.xpose.msra.mxu0 0.0
    %186 = vmatprep.subr.mxu0 0.0
    %187 = vmatpush1.xpose.msra.mxu0 0.0
    %188 = vmatprep.subr.mxu0 0.0
    %189 = vmatpush1.xpose.msra.mxu0 0.0
    %190 = vmatprep.subr.mxu0 0.0
    %191 = vmatpush1.xpose.msra.mxu0 0.0
    %192 = vmatprep.subr.mxu0 0.0
    %193 = vmatpush1.xpose.msra.mxu0 0.0
    %194 = vmatprep.subr.mxu0 0.0
    %195 = vmatpush1.xpose.msra.mxu0 0.0
    %196 = vmatprep.subr.mxu0 0.0
    %197 = vmatpush1.xpose.msra.mxu0 0.0
    %198 = vmatprep.subr.mxu0 0.0
    %199 = vmatpush1.xpose.msra.mxu0 0.0
    %200 = vmatprep.mubr.f32.mxu0 0.0
    %201 = vmatmul.mubr.f32.gmra.mrb[0].mxu0 %v52
    %v202 = vpop.f32.mrb[0].mxu0
    %v203 = vadd.f32 %v79, %v202
    %v204 = vpop.f32.mrb[0].mxu0
    %205 = vmatprep.mubr.f32.mxu0 0.0
    %206 = vmatmul.mubr.f32.gmra.mrb[0].mxu0 %v53
    %v207 = vpop.f32.mrb[0].mxu0
    %v208 = vadd.f32 %v84, %v207
    %v209 = vpop.f32.mrb[0].mxu0
    %210 = vmatprep.mubr.f32.mxu0 0.0
    %211 = vmatmul.mubr.f32.gmra.mrb[0].mxu0 %v54
    %v212 = vpop.f32.mrb[0].mxu0
    %v213 = vadd.f32 %v89, %v212
    %v214 = vpop.f32.mrb[0].mxu0
    %215 = vmatprep.mubr.f32.mxu0 0.0
    %216 = vmatmul.mubr.f32.gmra.mrb[0].mxu0 %v55
    %v217 = vpop.f32.mrb[0].mxu0
    %v218 = vadd.f32 %v94, %v217
    %v219 = vpop.f32.mrb[0].mxu0
    %220 = vmatprep.mubr.f32.mxu0 0.0
    %221 = vmatmul.mubr.f32.gmra.mrb[0].mxu0 %v56
    %v222 = vpop.f32.mrb[0].mxu0
    %v223 = vadd.f32 %v99, %v222
    %v224 = vpop.f32.mrb[0].mxu0
    %225 = vmatprep.mubr.f32.mxu0 0.0
    %226 = vmatmul.mubr.f32.gmra.mrb[0].mxu0 %v57
    %v227 = vpop.f32.mrb[0].mxu0
    %v228 = vadd.f32 %v104, %v227
    %v229 = vpop.f32.mrb[0].mxu0
    %230 = vmatprep.mubr.f32.mxu0 0.0
    %231 = vmatmul.mubr.f32.gmra.mrb[0].mxu0 %v58
    %v232 = vpop.f32.mrb[0].mxu0
    %v233 = vadd.f32 %v109, %v232
    %v234 = vpop.f32.mrb[0].mxu0
    %235 = vmatprep.mubr.f32.mxu0 0.0
    %236 = vmatmul.mubr.f32.gmra.mrb[0].mxu0 %v59
    %v237 = vpop.f32.mrb[0].mxu0
    %v238 = vadd.f32 %v114, %v237
    %v239 = vpop.f32.mrb[0].mxu0
    %240 = vmatprep.mubr.f32.mxu0 0.0
    %241 = vmatmul.mubr.f32.gmra.mrb[0].mxu0 %v60
    %v242 = vpop.f32.mrb[0].mxu0
    %v243 = vadd.f32 %v119, %v242
    %v244 = vpop.f32.mrb[0].mxu0
    %245 = vmatprep.mubr.f32.mxu0 0.0
    %246 = vmatmul.mubr.f32.gmra.mrb[0].mxu0 %v61
    %v247 = vpop.f32.mrb[0].mxu0
    %v248 = vadd.f32 %v124, %v247
    %v249 = vpop.f32.mrb[0].mxu0
    %250 = vmatprep.mubr.f32.mxu0 0.0
    %251 = vmatmul.mubr.f32.gmra.mrb[0].mxu0 %v62
    %v252 = vpop.f32.mrb[0].mxu0
    %v253 = vadd.f32 %v129, %v252
    %v254 = vpop.f32.mrb[0].mxu0
    %255 = vmatprep.mubr.f32.mxu0 0.0
    %256 = vmatmul.mubr.f32.gmra.mrb[0].mxu0 %v63
    %v257 = vpop.f32.mrb[0].mxu0
    %v258 = vadd.f32 %v134, %v257
    %v259 = vpop.f32.mrb[0].mxu0
    %260 = vdwg.mxu0
    %v261 = vmax.f32 %v203, 0.0
    %v262 = vmax.f32 %v208, 0.0
    %v263 = vmax.f32 %v213, 0.0
    %v264 = vmax.f32 %v218, 0.0
    %v265 = vmax.f32 %v223, 0.0
    %v266 = vmax.f32 %v228, 0.0
    %v267 = vmax.f32 %v233, 0.0
    %v268 = vmax.f32 %v238, 0.0
    %v269 = vmax.f32 %v243, 0.0
    %v270 = vmax.f32 %v248, 0.0
    %v271 = vmax.f32 %v253, 0.0
    %v272 = vmax.f32 %v258, 0.0
    %v273 = vld [vmem:[%s3] sm:$0xff]
    %v274 = vld [vmem:[%s3 + $0x8] sm:$0xff]
    %s275 = sld [smem:[#allocation2]]
    %v276 = vstv %s275
    %vm277 = vcmask 785408
    %v279 = vsel %vm277, %v273, 0
    %v282 = vsel %vm277, %v274, 0
    %284 = vmatprep.subr.mxu0 0.0
    %285 = vmatpush1.msra.mxu0 %v261
    %286 = vmatprep.subr.mxu0 0.0
    %287 = vmatpush1.msra.mxu0 %v262
    %288 = vmatprep.subr.mxu0 0.0
    %289 = vmatpush1.msra.mxu0 %v263
    %290 = vmatprep.subr.mxu0 0.0
    %291 = vmatpush1.msra.mxu0 %v264
    %292 = vmatprep.subr.mxu0 0.0
    %293 = vmatpush1.msra.mxu0 %v265
    %294 = vmatprep.subr.mxu0 0.0
    %295 = vmatpush1.msra.mxu0 %v266
    %296 = vmatprep.subr.mxu0 0.0
    %297 = vmatpush1.msra.mxu0 %v267
    %298 = vmatprep.subr.mxu0 0.0
    %299 = vmatpush1.msra.mxu0 %v268
    %300 = vmatprep.subr.mxu0 0.0
    %301 = vmatpush1.msra.mxu0 %v269
    %302 = vmatprep.subr.mxu0 0.0
    %303 = vmatpush1.msra.mxu0 %v270
    %304 = vmatprep.subr.mxu0 0.0
    %305 = vmatpush1.msra.mxu0 %v271
    %306 = vmatprep.subr.mxu0 0.0
    %307 = vmatpush1.msra.mxu0 %v272
    %308 = vmatprep.subr.mxu0 0.0
    %309 = vmatpush1.msra.mxu0 0.0
    %310 = vmatprep.subr.mxu0 0.0
    %311 = vmatpush1.msra.mxu0 0.0
    %312 = vmatprep.subr.mxu0 0.0
    %313 = vmatpush1.msra.mxu0 0.0
    %314 = vmatprep.subr.mxu0 0.0
    %315 = vmatpush1.msra.mxu0 0.0
    %316 = vmatprep.subr.mxu0 0.0
    %317 = vmatpush1.msra.mxu0 0.0
    %318 = vmatprep.subr.mxu0 0.0
    %319 = vmatpush1.msra.mxu0 0.0
    %320 = vmatprep.subr.mxu0 0.0
    %321 = vmatpush1.msra.mxu0 0.0
    %322 = vmatprep.subr.mxu0 0.0
    %323 = vmatpush1.msra.mxu0 0.0
    %324 = vmatprep.subr.mxu0 0.0
    %325 = vmatpush1.msra.mxu0 0.0
    %326 = vmatprep.subr.mxu0 0.0
    %327 = vmatpush1.msra.mxu0 0.0
    %328 = vmatprep.subr.mxu0 0.0
    %329 = vmatpush1.msra.mxu0 0.0
    %330 = vmatprep.subr.mxu0 0.0
    %331 = vmatpush1.msra.mxu0 0.0
    %332 = vmatprep.subr.mxu0 0.0
    %333 = vmatpush1.msra.mxu0 0.0
    %334 = vmatprep.subr.mxu0 0.0
    %335 = vmatpush1.msra.mxu0 0.0
    %336 = vmatprep.subr.mxu0 0.0
    %337 = vmatpush1.msra.mxu0 0.0
    %338 = vmatprep.subr.mxu0 0.0
    %339 = vmatpush1.msra.mxu0 0.0
    %340 = vmatprep.subr.mxu0 0.0
    %341 = vmatpush1.msra.mxu0 0.0
    %342 = vmatprep.subr.mxu0 0.0
    %343 = vmatpush1.msra.mxu0 0.0
    %344 = vmatprep.subr.mxu0 0.0
    %345 = vmatpush1.msra.mxu0 0.0
    %346 = vmatprep.subr.mxu0 0.0
    %347 = vmatpush1.msra.mxu0 0.0
    %348 = vmatprep.mubr.f32.mxu0 0.0
    %349 = vmatmul.mubr.f32.gmra.mrb[0].mxu0 %v279
    %v350 = vpop.f32.mrb[0].mxu0
    %v351 = vadd.f32 %v276, %v350
    %v352 = vpop.f32.mrb[0].mxu0
    %353 = vmatprep.mubr.f32.mxu0 0.0
    %354 = vmatmul.mubr.f32.gmra.mrb[0].mxu0 %v282
    %v355 = vpop.f32.mrb[0].mxu0
    %v356 = vadd.f32 %v276, %v355
    %v357 = vpop.f32.mrb[0].mxu0
    %358 = vdwg.mxu0
    %359 = vst [vmem:[#allocation6] sm:$0xff] %v351
    %360 = vst [vmem:[#allocation6 + $0x8] sm:$0xff] %v356
    // Predicated region
    $region26: #{tpu_custom_call.1} parent=1 // pred_check
      _
    $region27: #{tpu_custom_call.1} parent=1 // pred_check_branch
      %362 = sbr.rel (0) target = $region29
    $region28: #{tpu_custom_call.1} parent=1 // pred_region
      %s364 = ssub.s32 256, 256
      %365 = vsyncadd [#allocation5], %s364
      %s366 = sshll.u32 [#allocation6], 4
      %s367 = int_to_ptr.vmem [resolvable:$true] %s366
      %372 = dma.vmem_to_hbm [thread:$0]  %s367, 256, %s5, [#allocation5], 128, 128, 8
    $region29: #{tpu_custom_call.1} parent=1 // pred_fallthru
      _
    // Predicated region
    $region30: #{tpu_custom_call.1} parent=1 // pred_check
      _
    $region31: #{tpu_custom_call.1} parent=1 // pred_check_branch
      %374 = sbr.rel (0) target = $region33
    $region32: #{tpu_custom_call.1} parent=1 // pred_region
      %375 = dma.done [#allocation5], 256
    $region33: #{tpu_custom_call.1} parent=1 // pred_fallthru
      _
    %376 = vsyncpa [#allocation4], 1
    %377 = vsyncpa [#allocation5], 1

</llo_original>
